<compile_context>
chip_gen: v7x
topology: tpu7x:2x2x1
jax: 0.10.0
libtpu: 0.0.40
codegen_flags: <defaults>
</compile_context>

<pallas_src>
import math

import jax
import jax.numpy as jnp
from jax import lax
from jax.experimental import pallas as pl
from jax.experimental.pallas import tpu as pltpu

# ---- constants from the PyTorch module -------------------------------------
_AMIN = 1e-10           # AmplitudeToDB amin (power)
_TOP_DB = 80.0
_CLAMP_MIN = -50.0
_CLAMP_MAX = 80.0
_MM_MIN = -79.6482
_MM_MAX = 50.6842

# Fused scalar constants:
#   10 * log10(v)                        == _DB_K  * ln(v)
#   (y - MM_MIN)/(MM_MAX - MM_MIN)*2 - 1 == y * _SCALE + _OFFSET
#   clip(x_db, lo, 80) * S + O           == clip(x_db*S + O, lo*S + O, 80*S + O)  (S > 0)
_DB_K = 10.0 / math.log(10.0)
_SCALE = 2.0 / (_MM_MAX - _MM_MIN)
_OFFSET = -_MM_MIN * _SCALE - 1.0
_DB_KS = _DB_K * _SCALE
_HI = _CLAMP_MAX * _SCALE + _OFFSET

# ---- tiling policy ----------------------------------------------------------
_LANE = 128
_SUBLANE = 8
_TARGET_BLOCK_BYTES = 4 * 1024 * 1024   # aim per input block (pipelines well)
_MIN_BLOCK_BYTES = 512 * 1024           # don't shrink below this chasing steps
_TARGET_STEPS = 8                       # >= 4 grid steps per core on 2-core parts
_TWO_PASS_ROW_BYTES = 2 * 1024 * 1024   # B == 1: rows above this go two-pass


def _round_up(x: int, m: int) -> int:
    return ((x + m - 1) // m) * m


def _vmem_budget():
    """Returns (vmem_limit_bytes, max single input-block bytes), generation aware."""
    cap = 64 * 1024 * 1024          # conservative default = v7x (64 MiB per TC)
    try:
        info = pltpu.get_tpu_info()
        got = getattr(info, "vmem_capacity_bytes", None)
        if got:
            cap = int(got)          # 128 MiB on v5e/v6e, 64 MiB on v7x
    except Exception:
        pass
    limit = max(32 * 1024 * 1024, min((cap * 3) // 4, 112 * 1024 * 1024))
    # ~2x in + 2x out (double buffering) + f32 temporaries ~= 6x one input block.
    return limit, limit // 6


def _pick_bt(B, row_bytes, cap_block):
    """Batch rows per single-pass block; None -> rows too large, use two-pass.

    A block occupies at least 8 sublane rows of VMEM due to (8,128) tiling, and
    the second-minor block dim must be a multiple of 8 or equal to B.
    """
    if _SUBLANE * row_bytes > cap_block:
        return None
    if B <= _SUBLANE:
        return B                                   # block dim == full dim: legal
    bt = max(1, _TARGET_BLOCK_BYTES // row_bytes)
    bt = max(_SUBLANE, (bt // _SUBLANE) * _SUBLANE)
    bt = min(bt, (B // _SUBLANE) * _SUBLANE)
    # Prefer >= _TARGET_STEPS grid steps, but never drop below _MIN_BLOCK_BYTES
    # per block (per-step overhead dominates for KB-scale blocks).
    steps_bt = max(_SUBLANE, ((B // _TARGET_STEPS) // _SUBLANE) * _SUBLANE)
    if steps_bt * row_bytes >= _MIN_BLOCK_BYTES:
        bt = min(bt, steps_bt)
    return bt


# ---- kernels ----------------------------------------------------------------
def _apply_norm(x, row_max_f32):
    """dB conversion + top_db floor + clamp + MinMax, scale folded into bounds."""
    lo = (jnp.maximum(_DB_K * jnp.log(jnp.maximum(row_max_f32, _AMIN)) - _TOP_DB,
                      _CLAMP_MIN) * _SCALE + _OFFSET)                  # (bt, 1)
    x_s = _DB_KS * jnp.log(jnp.maximum(x.astype(jnp.float32), _AMIN)) + _OFFSET
    return jnp.minimum(jnp.maximum(x_s, lo), _HI)


def _atst_norm_kernel(x_ref, o_ref):
    # Single pass: block (bt, N) holds bt full flattened (C*F*T) rows.
    x = x_ref[...]
    # Per-row max on the *raw* power (log/clamp are monotone); cast only the
    # (bt, 1) result, avoiding a full-block f32 materialization.
    row_max = jnp.max(x, axis=1, keepdims=True).astype(jnp.float32)
    o_ref[...] = _apply_norm(x, row_max).astype(o_ref.dtype)


def _make_row_max_kernel(n_valid, chunk, need_mask):
    # Two-pass / pass 1: running per-row max over N-chunks. Chunk axis is last
    # ("arbitrary"); the (bt, 1) output block is resident across it.
    def kernel(x_ref, m_ref):
        c = pl.program_id(1)

        @pl.when(c == 0)
        def _():
            m_ref[...] = jnp.full_like(m_ref, -jnp.inf)

        x = x_ref[...]
        if need_mask:   # static: the last chunk extends past N -> mask OOB cols
            col = c * chunk + lax.broadcasted_iota(jnp.int32, x.shape, 1)
            x = jnp.where(col < n_valid, x, -jnp.inf)
        m_ref[...] = jnp.maximum(
            m_ref[...], jnp.max(x, axis=1, keepdims=True).astype(jnp.float32))

    return kernel


def _atst_apply_kernel(x_ref, m_ref, o_ref):
    # Two-pass / pass 2: elementwise apply with the precomputed per-row max.
    o_ref[...] = _apply_norm(x_ref[...], m_ref[...]).astype(o_ref.dtype)


# ---- wrapper ----------------------------------------------------------------
def atst_norm(spec: jax.Array, *, force_two_pass: bool = False,
              two_pass_chunk: int | None = None) -> jax.Array:
    """spec: (B, C, F, T) power spectrogram. Returns same shape/dtype."""
    B, C, F, T = spec.shape
    N = C * F * T
    itemsize = spec.dtype.itemsize
    row_bytes = N * itemsize

    vmem_limit, cap_block = _vmem_budget()
    x2 = spec.reshape(B, N)              # zero-copy view; no padding anywhere

    bt = _pick_bt(B, row_bytes, cap_block)
    two_pass = (force_two_pass or bt is None
                or (B == 1 and row_bytes >= _TWO_PASS_ROW_BYTES))

    if not two_pass:
        out2 = pl.pallas_call(
            _atst_norm_kernel,
            out_shape=jax.ShapeDtypeStruct((B, N), spec.dtype),
            grid=(pl.cdiv(B, bt),),
            in_specs=[pl.BlockSpec((bt, N), lambda i: (i, 0))],
            out_specs=pl.BlockSpec((bt, N), lambda i: (i, 0)),
            compiler_params=pltpu.CompilerParams(
                dimension_semantics=("parallel",),
                vmem_limit_bytes=vmem_limit),
            cost_estimate=pl.CostEstimate(
                flops=6 * B * N, transcendentals=B * N,
                bytes_accessed=2 * B * N * itemsize),
        )(x2)
        return out2.reshape(B, C, F, T)

    # ---- two-pass fallback: per-row max kernel, then apply kernel ----------
    bt2 = B if B <= _SUBLANE else _SUBLANE
    if two_pass_chunk is None:
        chunk = (_TARGET_BLOCK_BYTES // (_SUBLANE * itemsize)) // _LANE * _LANE
        chunk = max(_LANE, chunk)
    else:
        chunk = max(_LANE, (two_pass_chunk // _LANE) * _LANE)
    chunk = min(chunk, _round_up(N, _LANE))
    need_mask = (N % chunk) != 0
    nb, nc = pl.cdiv(B, bt2), pl.cdiv(N, chunk)

    # Pass 1: per-row max of the raw power (the chunk axis accumulates, so it
    # must stay "arbitrary"; pass 2 carries the bulk of the traffic and is
    # fully "parallel" for megacore sharding).
    maxes = pl.pallas_call(
        _make_row_max_kernel(N, chunk, need_mask),
        out_shape=jax.ShapeDtypeStruct((B, 1), jnp.float32),
        grid=(nb, nc),
        in_specs=[pl.BlockSpec((bt2, chunk), lambda b, c: (b, c))],
        out_specs=pl.BlockSpec((bt2, 1), lambda b, c: (b, 0)),
        compiler_params=pltpu.CompilerParams(
            dimension_semantics=("parallel", "arbitrary"),
            vmem_limit_bytes=vmem_limit),
        cost_estimate=pl.CostEstimate(
            flops=2 * B * N, transcendentals=0,
            bytes_accessed=B * N * itemsize + B * 4),
    )(x2)

    out2 = pl.pallas_call(
        _atst_apply_kernel,
        out_shape=jax.ShapeDtypeStruct((B, N), spec.dtype),
        grid=(nb, nc),
        in_specs=[pl.BlockSpec((bt2, chunk), lambda b, c: (b, c)),
                  pl.BlockSpec((bt2, 1), lambda b, c: (b, 0))],
        out_specs=pl.BlockSpec((bt2, chunk), lambda b, c: (b, c)),
        compiler_params=pltpu.CompilerParams(
            dimension_semantics=("parallel", "parallel"),
            vmem_limit_bytes=vmem_limit),
        cost_estimate=pl.CostEstimate(
            flops=6 * B * N, transcendentals=B * N,
            bytes_accessed=2 * B * N * itemsize + B * 4),
    )(x2, maxes)
    return out2.reshape(B, C, F, T)


def atst_norm_ref(spec: jax.Array) -> jax.Array:
    """Pure-JAX reference matching the PyTorch module."""
    x = spec.astype(jnp.float32)
    x_db = 10.0 * jnp.log10(jnp.maximum(x, _AMIN))
    bmax = jnp.max(x_db, axis=(1, 2, 3), keepdims=True)
    x_db = jnp.maximum(x_db, bmax - _TOP_DB)
    x_db = jnp.clip(x_db, _CLAMP_MIN, _CLAMP_MAX)
    out = (x_db - _MM_MIN) / (_MM_MAX - _MM_MIN) * 2.0 - 1.0
    return out.astype(spec.dtype)


if __name__ == "__main__":
    key = jax.random.PRNGKey(0)
    k1, k2, k3 = jax.random.split(key, 3)

    def _mk(k, shape):
        # Power spectrogram: non-negative values with a large dynamic range.
        u = jax.random.uniform(k, shape, jnp.float32, 0.0, 1.0)
        return (u ** 4) * 1e3

    # 1) Main single-pass path (lane-dense: N = 1024 is a multiple of 128).
    spec = _mk(k1, (2, 4, 16, 16))
    out = jax.block_until_ready(atst_norm(spec))
    ref = atst_norm_ref(spec)
    assert out.shape == spec.shape and out.dtype == spec.dtype
    err = float(jnp.max(jnp.abs(out - ref)))
    assert jnp.allclose(out, ref, atol=1e-5, rtol=1e-5), err

    # 2) N not a multiple of 128: still no pad/slice (full-row block), masked
    #    tail stores inside the kernel only.
    spec2 = _mk(k2, (3, 2, 5, 7))
    out2 = jax.block_until_ready(atst_norm(spec2))
    assert jnp.allclose(out2, atst_norm_ref(spec2), atol=1e-5, rtol=1e-5)

    # 3) Two-pass fallback (forced; chunk chosen so the in-kernel tail mask and
    #    the running-max accumulation across chunks are both exercised).
    spec3 = _mk(k3, (1, 4, 16, 16))
    out3 = jax.block_until_ready(
        atst_norm(spec3, force_two_pass=True, two_pass_chunk=384))
    assert jnp.allclose(out3, atst_norm_ref(spec3), atol=1e-5, rtol=1e-5)

    print("KERNEL_OK")
</pallas_src>

<mosaic_0001>
module attributes {stable_mosaic.version = 11 : i64} {
  func.func @_atst_norm_kernel(%arg0: i32, %arg1: memref<2x1024xf32, #tpu.memory_space<vmem>>, %arg2: memref<2x1024xf32, #tpu.memory_space<vmem>>) attributes {dimension_semantics = [#tpu.dimension_semantics<parallel>], iteration_bounds = array<i64: 1>, scalar_prefetch = 0 : i64, scratch_operands = 0 : i64, tpu.core_type = #tpu.core_type<tc>, window_params = [{transform_indices = @transform_0, window_bounds = array<i64: 2, 1024>}, {transform_indices = @transform_1, window_bounds = array<i64: 2, 1024>}]} {
    %c0 = arith.constant 0 : index
    %c0_0 = arith.constant 0 : index
    %0 = vector.load %arg1[%c0, %c0_0] : memref<2x1024xf32, #tpu.memory_space<vmem>>, vector<2x1024xf32>
    %cst = arith.constant dense<0xFF800000> : vector<2xf32>
    %1 = vector.multi_reduction <maximumf>, %0, %cst [1] : vector<2x1024xf32> to vector<2xf32>
    %2 = vector.shape_cast %1 : vector<2xf32> to vector<2x1xf32>
    %cst_1 = arith.constant 1.000000e-10 : f32
    %3 = vector.broadcast %cst_1 : f32 to vector<2x1xf32>
    %4 = arith.maximumf %2, %3 : vector<2x1xf32>
    %5 = math.log %4 : vector<2x1xf32>
    %cst_2 = arith.constant 4.34294462 : f32
    %6 = vector.broadcast %cst_2 : f32 to vector<2x1xf32>
    %7 = arith.mulf %6, %5 : vector<2x1xf32>
    %cst_3 = arith.constant 8.000000e+01 : f32
    %8 = vector.broadcast %cst_3 : f32 to vector<2x1xf32>
    %9 = arith.subf %7, %8 : vector<2x1xf32>
    %cst_4 = arith.constant -5.000000e+01 : f32
    %10 = vector.broadcast %cst_4 : f32 to vector<2x1xf32>
    %11 = arith.maximumf %9, %10 : vector<2x1xf32>
    %cst_5 = arith.constant 0.0153453788 : f32
    %12 = vector.broadcast %cst_5 : f32 to vector<2x1xf32>
    %13 = arith.mulf %11, %12 : vector<2x1xf32>
    %cst_6 = arith.constant 0.222231776 : f32
    %14 = vector.broadcast %cst_6 : f32 to vector<2x1xf32>
    %15 = arith.addf %13, %14 : vector<2x1xf32>
    %cst_7 = arith.constant 1.000000e-10 : f32
    %16 = vector.broadcast %cst_7 : f32 to vector<2x1024xf32>
    %17 = arith.maximumf %0, %16 : vector<2x1024xf32>
    %18 = math.log %17 : vector<2x1024xf32>
    %cst_8 = arith.constant 0.0666441321 : f32
    %19 = vector.broadcast %cst_8 : f32 to vector<2x1024xf32>
    %20 = arith.mulf %19, %18 : vector<2x1024xf32>
    %cst_9 = arith.constant 0.222231776 : f32
    %21 = vector.broadcast %cst_9 : f32 to vector<2x1024xf32>
    %22 = arith.addf %20, %21 : vector<2x1024xf32>
    %23 = vector.broadcast %15 : vector<2x1xf32> to vector<2x1024xf32>
    %24 = arith.maximumf %22, %23 : vector<2x1024xf32>
    %cst_10 = arith.constant 1.449862 : f32
    %25 = vector.broadcast %cst_10 : f32 to vector<2x1024xf32>
    %26 = arith.minimumf %24, %25 : vector<2x1024xf32>
    %c0_11 = arith.constant 0 : index
    %c0_12 = arith.constant 0 : index
    %27 = vector.load %arg2[%c0_11, %c0_12] : memref<2x1024xf32, #tpu.memory_space<vmem>>, vector<2x1024xf32>
    tpu.vector_store %arg2[%c0_11, %c0_12], %26 {strides = array<i32>} : memref<2x1024xf32, #tpu.memory_space<vmem>>, vector<2x1024xf32>,
    return
  }
  func.func @transform_0(%arg0: i32) -> (i32, i32) {
    %c0_i32 = arith.constant 0 : i32
    %c0_i32_0 = arith.constant 0 : i32
    return %arg0, %c0_i32 : i32, i32
  }
  func.func @transform_1(%arg0: i32) -> (i32, i32) {
    %c0_i32 = arith.constant 0 : i32
    %c0_i32_0 = arith.constant 0 : i32
    return %arg0, %c0_i32 : i32, i32
  }
}

</mosaic_0001>

<llo_original>
// kernel: tpu_custom_call.1
$region0: #{tpu_custom_call.1}
  #allocation0 [shape = 'u32[]', space=smem, size = 0x4, offset = 0x4, fixed_abs, tag = 'smem constant byte address 0x4 - core index']
  #allocation1 [shape = 'u32[144,128]{1,0:T(1,128)}', space=vmem, size = 0x12000, scoped, tag = 'internal scratch']
  %s0 = inlined_call_operand.hbm [shape: f32[2,1024], index: 0, kind: input, shape index: {}]
  %s1 = inlined_call_operand.hbm [shape: f32[2,1024], index: 1, kind: output, shape index: {}]
  %s2 = sld [smem:[#allocation0]]
  $region18: #{tpu_custom_call.1} parent=0
    _
  %s4 = ssub.s32 1, %s2
  %s5 = scalar_select 0, %s4, %s2
  $region1: #{tpu_custom_call.1} parent=0
    #allocation2 [shape = 'u8[8192]{0}', space=vmem, size = 0x2000, scoped, tag = 'input window, operand 0, single buffered']
    #allocation3 [shape = 's32[1]{0}', space=sflag, size = 0x4, scoped, tag = 'scoped memory for tpu_custom_call.1']
    #allocation4 [shape = 's32[1]{0}', space=sflag, size = 0x4, scoped, tag = 'scoped memory for tpu_custom_call.1']
    #allocation5 [shape = 'u8[8192]{0}', space=vmem, size = 0x2000, scoped, tag = 'output window, operand 0, single buffered']
    %6 = vsyncpa [#allocation3], 0
    %7 = vsyncpa [#allocation4], 0
    // Predicated region
    $region2: #{tpu_custom_call.1} parent=1 // pred_check
      _
    $region3: #{tpu_custom_call.1} parent=1 // pred_check_branch
      %9 = sbr.rel (0) target = $region5
    $region4: #{tpu_custom_call.1} parent=1 // pred_region
      %s11 = ssub.s32 256, 256
      %12 = vsyncadd [#allocation3], %s11
      %s14 = sshll.u32 [#allocation2], 4
      %s15 = int_to_ptr.vmem [resolvable:$true] %s14
      %17 = dma.hbm_to_vmem [thread:$0]  %s0, 256, %s15, [#allocation3]
    $region5: #{tpu_custom_call.1} parent=1 // pred_fallthru
      _
    // Predicated region
    $region6: #{tpu_custom_call.1} parent=1 // pred_check
      _
    $region7: #{tpu_custom_call.1} parent=1 // pred_check_branch
      %19 = sbr.rel (0) target = $region9
    $region8: #{tpu_custom_call.1} parent=1 // pred_region
      %20 = dma.done [#allocation3], 256
    $region9: #{tpu_custom_call.1} parent=1 // pred_fallthru
      _
    %v21 = vld [vmem:[#allocation2] sm:$0xff]
    %v22 = vld [vmem:[#allocation2 + $0x8] sm:$0xff]
    %v25 = vcombine.high %v21, %v21
    %v27 = vunpack.c.l.s4 1983009808
    %v28 = vunpack.c.0.s8 %v27
    %v29 = vlaneseq
    %v30 = vshrl.u32 %v29, 7
    %v31 = vsub.s32 %v28, %v30
    %v32 = vrot.slane %v21, %v31
    %v34 = vunpack.c.l.s4 1983009808
    %v35 = vunpack.c.0.s8 %v34
    %v36 = vlaneseq
    %v37 = vshrl.u32 %v36, 7
    %v38 = vsub.s32 %v35, %v37
    %v39 = vrot.slane %v25, %v38
    %v40 = vcombine.high %v32, %v32
    %v41 = vcombine.high %v39, %v39
    %v42 = vcombine.high %v22, %v22
    %v44 = vunpack.c.l.s4 1983009808
    %v45 = vunpack.c.0.s8 %v44
    %v46 = vlaneseq
    %v47 = vshrl.u32 %v46, 7
    %v48 = vsub.s32 %v45, %v47
    %v49 = vrot.slane %v22, %v48
    %v51 = vunpack.c.l.s4 1983009808
    %v52 = vunpack.c.0.s8 %v51
    %v53 = vlaneseq
    %v54 = vshrl.u32 %v53, 7
    %v55 = vsub.s32 %v52, %v54
    %v56 = vrot.slane %v42, %v55
    %v57 = vcombine.high %v49, %v49
    %v58 = vcombine.high %v56, %v56
    %vm67 = vcmask 1041408
    %v68 = vsel %vm67, %v32, -inf
    %v69 = vsel %vm67, %v40, -inf
    %v70 = vsel %vm67, %v39, -inf
    %v71 = vsel %vm67, %v41, -inf
    %v72 = vsel %vm67, %v49, -inf
    %v73 = vmax.f32 %v68, %v72
    %v74 = vsel %vm67, %v57, -inf
    %v75 = vmax.f32 %v69, %v74
    %v76 = vsel %vm67, %v56, -inf
    %v77 = vmax.f32 %v70, %v76
    %v78 = vsel %vm67, %v58, -inf
    %v79 = vmax.f32 %v71, %v78
    %v80 = vmax.f32 %v73, %v75
    %v81 = vmax.f32 %v77, %v79
    %v82 = vmax.f32 %v80, %v81
    %83 = vmax.xlane.f32.xlu0 %v82
    %v84 = vpop.xlane.xlu0 %83
    %v85 = vmax.f32 %v84, 1e-10
    %v86 = vlog2.pop %v85
    %v87 = vmul.f32 %v86, 0.6931472
    %v88 = vmul.f32 %v87, 4.3429446
    %v89 = vsub.f32 %v88, 80.0
    %v90 = vmax.f32 %v89, -50.0
    %v91 = vmul.f32 %v90, 0.015345379
    %v92 = vadd.f32 %v91, 0.22223178
    %v93 = vmax.f32 %v21, 1e-10
    %v94 = vmax.f32 %v22, 1e-10
    %v95 = vlog2.pop %v93
    %v96 = vmul.f32 %v95, 0.6931472
    %v97 = vlog2.pop %v94
    %v98 = vmul.f32 %v97, 0.6931472
    %v99 = vmul.f32 %v96, 0.06664413
    %v100 = vmul.f32 %v98, 0.06664413
    %v101 = vadd.f32 %v99, 0.22223178
    %v102 = vadd.f32 %v100, 0.22223178
    %v105 = vunpack.c.l.s4 269488144
    %v106 = vunpack.c.0.s8 %v105
    %v107 = vlaneseq
    %v108 = vshrl.u32 %v107, 7
    %v109 = vsub.s32 %v106, %v108
    %v110 = vrot.slane %v92, %v109
    %v112 = vmax.f32 %v101, %v110
    %v113 = vmax.f32 %v102, %v110
    %v114 = vmin.f32 %v112, 1.449862
    %v115 = vmin.f32 %v113, 1.449862
    %116 = vst [vmem:[#allocation5] sm:$0xff] %v114
    %117 = vst [vmem:[#allocation5 + $0x8] sm:$0xff] %v115
    // Predicated region
    $region10: #{tpu_custom_call.1} parent=1 // pred_check
      _
    $region11: #{tpu_custom_call.1} parent=1 // pred_check_branch
      %119 = sbr.rel (0) target = $region13
    $region12: #{tpu_custom_call.1} parent=1 // pred_region
      %s121 = ssub.s32 256, 256
      %122 = vsyncadd [#allocation4], %s121
      %s124 = sshll.u32 [#allocation5], 4
      %s125 = int_to_ptr.vmem [resolvable:$true] %s124
      %127 = dma.vmem_to_hbm [thread:$0]  %s125, 256, %s1, [#allocation4]
    $region13: #{tpu_custom_call.1} parent=1 // pred_fallthru
      _
    // Predicated region
    $region14: #{tpu_custom_call.1} parent=1 // pred_check
      _
    $region15: #{tpu_custom_call.1} parent=1 // pred_check_branch
      %129 = sbr.rel (0) target = $region17
    $region16: #{tpu_custom_call.1} parent=1 // pred_region
      %130 = dma.done [#allocation4], 256
    $region17: #{tpu_custom_call.1} parent=1 // pred_fallthru
      _
    %131 = vsyncpa [#allocation3], 1
    %132 = vsyncpa [#allocation4], 1

</llo_original>
